<compile_context>
chip_gen: v6e
topology: v6e:2x2x1
jax: 0.10.0
libtpu: 0.0.40
codegen_flags: <defaults>
</compile_context>

<pallas_src>
import functools

import jax
import jax.numpy as jnp
from jax import lax
from jax.experimental import pallas as pl
from jax.experimental.pallas import tpu as pltpu

H1, H2 = 64, 32          # hidden sizes from the PyTorch module
LANES = 128              # TPU lane width


def _ru8(n):
    return (n + 7) // 8 * 8


def _default_use_bf16():
    """bf16 EUP/VPU exists on v6e/v7x only; keep f32 activations elsewhere."""
    try:
        kind = jax.devices()[0].device_kind.lower()
    except Exception:
        return False
    return ("v6" in kind) or ("v7" in kind)


def actor_critic_fused_kernel(x_ref, p_ref, out_ref, *,
                              sd_pad, n_actions, out_w, offs, act_dtype):
    off_w1, off_b1, off_w2, off_b2, off_w3, off_b3 = offs
    x = x_ref[...]                                            # (TB, sd_pad)

    # static slices into the packed parameter slab (zero runtime cost)
    w1 = p_ref[off_w1:off_w1 + sd_pad, :]                     # (sd_pad, 128)
    b1 = p_ref[off_b1:off_b1 + 1, :]                          # (1, 128)
    w2 = p_ref[off_w2:off_w2 + LANES, :]                      # (128, 128)
    b2 = p_ref[off_b2:off_b2 + 1, :]
    w3 = p_ref[off_w3:off_w3 + LANES, :]                      # (128, 128)
    b3 = p_ref[off_b3:off_b3 + 1, :]

    def act(t):
        # tanh evaluated in act_dtype (bf16 on v6e/v7x halves EUP pushes);
        # cast back to f32 so matmul accumulation stays exact.
        return jnp.tanh(t.astype(act_dtype)).astype(jnp.float32)

    # fused actor+critic MLP: 3 lane-dense matmuls instead of 6 tiny ones
    h1 = act(jnp.dot(x, w1, preferred_element_type=jnp.float32) + b1)
    h2 = act(jnp.dot(h1, w2, preferred_element_type=jnp.float32) + b2)
    z = jnp.dot(h2, w3, preferred_element_type=jnp.float32) + b3      # (TB, 128)
    # z cols [0, n_actions) = actor logits, col n_actions = critic value, rest 0

    # lane masks built once at (1, 128) and broadcast (saves ~2x64 VALU cmps/tile)
    col = lax.broadcasted_iota(jnp.int32, (1, LANES), 1)
    actor_mask = col < n_actions
    value_mask = col == n_actions

    # masked, max-subtracted softmax over the actor columns only
    logits = jnp.where(actor_mask, z, -jnp.inf)
    m = jnp.max(logits, axis=-1, keepdims=True)
    e = jnp.exp((logits - m).astype(act_dtype)).astype(jnp.float32)   # masked -> 0
    denom = jnp.sum(e, axis=-1, keepdims=True)
    r = pl.reciprocal(denom, approx=True)        # EUP slot (co-issues with exp)
    r = r * (2.0 - denom * r)                    # one Newton step -> near-exact
    probs = e * r

    # [probs..., value, 0, ...]; store only the first out_w lanes (narrow slab)
    result = jnp.where(value_mask, z, probs)                  # (TB, 128)
    out_ref[...] = result[:, :out_w]


def pack_params(params, state_dim, n_actions):
    """Pack all 12 weight/bias arrays into one (rows, 128) f32 slab (one DMA)."""
    assert n_actions >= 1 and n_actions + 1 <= LANES
    # layer 1: [wa1 | wc1]
    w1 = jnp.concatenate([params["wa1"], params["wc1"]], axis=1)        # (sd, 128)
    b1 = jnp.concatenate([params["ba1"], params["bc1"]], axis=1)        # (1, 128)
    # layer 2: block-diag(wa2, wc2), zero-padded to 128 output lanes
    w2 = jnp.zeros((2 * H1, LANES), jnp.float32)
    w2 = w2.at[:H1, :H2].set(params["wa2"]).at[H1:, H2:2 * H2].set(params["wc2"])
    b2 = jnp.zeros((1, LANES), jnp.float32)
    b2 = b2.at[:, :H2].set(params["ba2"]).at[:, H2:2 * H2].set(params["bc2"])
    # layer 3: block-diag(wa3, wc3), zero-padded to 128 output lanes
    w3 = jnp.zeros((LANES, LANES), jnp.float32)
    w3 = w3.at[:H2, :n_actions].set(params["wa3"])
    w3 = w3.at[H2:2 * H2, n_actions:n_actions + 1].set(params["wc3"])
    b3 = jnp.zeros((1, LANES), jnp.float32)
    b3 = b3.at[:, :n_actions].set(params["ba3"])
    b3 = b3.at[:, n_actions:n_actions + 1].set(params["bc3"])

    # 8-aligned row offsets for clean sublane-tiled in-kernel slices
    off_w1 = 0
    off_b1 = _ru8(state_dim)   # rows state_dim..off_b1-1 stay zero (x is zero-padded to 8)
    off_w2 = off_b1 + 8
    off_b2 = off_w2 + LANES
    off_w3 = off_b2 + 8
    off_b3 = off_w3 + LANES
    total = off_b3 + 8

    slab = jnp.zeros((total, LANES), jnp.float32)
    slab = slab.at[off_w1:off_w1 + state_dim].set(w1)
    slab = slab.at[off_b1:off_b1 + 1].set(b1)
    slab = slab.at[off_w2:off_w2 + LANES].set(w2)
    slab = slab.at[off_b2:off_b2 + 1].set(b2)
    slab = slab.at[off_w3:off_w3 + LANES].set(w3)
    slab = slab.at[off_b3:off_b3 + 1].set(b3)
    return slab, (off_w1, off_b1, off_w2, off_b2, off_w3, off_b3)


def actor_critic_forward(x, slab, offs, *, n_actions, tb_max=1024, use_bf16=None):
    """x: (B, state_dim) f32. Returns (actor_probs (B, n_actions), value (B, 1))."""
    B, state_dim = x.shape
    if use_bf16 is None:
        use_bf16 = _default_use_bf16()
    act_dtype = jnp.bfloat16 if use_bf16 else jnp.float32

    sd_pad = _ru8(state_dim)            # clean (8,128) contraction on the 1st matmul
    out_w = _ru8(n_actions + 1)         # narrow lane-dense(ish) output slab
    assert n_actions >= 1 and out_w <= LANES

    # batch tile: big enough to amortize ~0.35us/step overhead, split into >=2
    # grid steps for large B so both v7x TensorCores get work.
    tb = min(tb_max, _ru8(max(8, (B + 1) // 2)))
    b_pad = pl.cdiv(B, tb) * tb

    x_p = jnp.pad(x, ((0, b_pad - B), (0, sd_pad - state_dim)))

    kernel = functools.partial(
        actor_critic_fused_kernel,
        sd_pad=sd_pad, n_actions=n_actions, out_w=out_w, offs=offs,
        act_dtype=act_dtype)

    out = pl.pallas_call(
        kernel,
        out_shape=jax.ShapeDtypeStruct((b_pad, out_w), jnp.float32),
        grid_spec=pltpu.PrefetchScalarGridSpec(
            num_scalar_prefetch=0,
            grid=(b_pad // tb,),
            in_specs=[
                pl.BlockSpec((tb, sd_pad), lambda i: (i, 0)),    # x batch tile
                pl.BlockSpec(slab.shape, lambda i: (0, 0)),      # params, resident
            ],
            out_specs=pl.BlockSpec((tb, out_w), lambda i: (i, 0)),
        ),
        compiler_params=pltpu.CompilerParams(
            dimension_semantics=("parallel",)),                  # megacore on v7x
    )(x_p, slab)

    probs = out[:B, :n_actions]
    value = out[:B, n_actions:n_actions + 1]
    return probs, value


def build_actor_critic(params, state_dim, n_actions, *, tb_max=1024, use_bf16=None):
    """Pack params ONCE (hoisted out of the hot path) and return a jit-able fwd."""
    slab, offs = pack_params(params, state_dim, n_actions)
    if use_bf16 is None:
        use_bf16 = _default_use_bf16()

    def forward(x):
        return actor_critic_forward(x, slab, offs, n_actions=n_actions,
                                    tb_max=tb_max, use_bf16=use_bf16)
    return forward


def init_params(key, state_dim, n_actions):
    """Deterministic synthetic init (PyTorch-Linear-style uniform bounds)."""
    def linear(key, fan_in, fan_out):
        kw, kb = jax.random.split(key)
        bound = 1.0 / jnp.sqrt(jnp.float32(fan_in))
        w = jax.random.uniform(kw, (fan_in, fan_out), jnp.float32, -bound, bound)
        b = jax.random.uniform(kb, (1, fan_out), jnp.float32, -bound, bound)
        return w, b

    keys = jax.random.split(key, 6)
    p = {}
    p["wa1"], p["ba1"] = linear(keys[0], state_dim, H1)
    p["wa2"], p["ba2"] = linear(keys[1], H1, H2)
    p["wa3"], p["ba3"] = linear(keys[2], H2, n_actions)
    p["wc1"], p["bc1"] = linear(keys[3], state_dim, H1)
    p["wc2"], p["bc2"] = linear(keys[4], H1, H2)
    p["wc3"], p["bc3"] = linear(keys[5], H2, 1)
    return p


def reference_forward(x, p):
    """Plain-JAX reference for correctness check."""
    h = jnp.tanh(x @ p["wa1"] + p["ba1"])
    h = jnp.tanh(h @ p["wa2"] + p["ba2"])
    probs = jax.nn.softmax(h @ p["wa3"] + p["ba3"], axis=-1)
    g = jnp.tanh(x @ p["wc1"] + p["bc1"])
    g = jnp.tanh(g @ p["wc2"] + p["bc2"])
    value = g @ p["wc3"] + p["bc3"]
    return probs, value


if __name__ == "__main__":
    key = jax.random.PRNGKey(0)
    k_params, k_x = jax.random.split(key)

    state_dim = 4   # CartPole-v1 observation dim
    n_actions = 2   # CartPole-v1 action count
    batch = 8

    params = init_params(k_params, state_dim, n_actions)
    x = jax.random.normal(k_x, (batch, state_dim), jnp.float32)

    use_bf16 = _default_use_bf16()
    forward = jax.jit(build_actor_critic(params, state_dim, n_actions,
                                         use_bf16=use_bf16))

    probs, value = forward(x)
    jax.block_until_ready((probs, value))

    ref_probs, ref_value = reference_forward(x, params)
    assert probs.shape == (batch, n_actions)
    assert value.shape == (batch, 1)

    if use_bf16:
        # bf16 tanh/exp on v6e/v7x trades ~1e-2 absolute accuracy for EUP speed
        tol_p = dict(atol=5e-2, rtol=5e-2)
        tol_v = dict(atol=1e-1, rtol=1e-1)
    else:
        # f32 path (v5e/v4/fallback): exact zero-padded fusion
        tol_p = dict(atol=1e-4, rtol=1e-4)
        tol_v = dict(atol=1e-4, rtol=1e-4)

    assert jnp.allclose(value, ref_value, **tol_v)
    assert jnp.allclose(probs, ref_probs, **tol_p)
    # sum-to-1 is tight regardless of act dtype (Newton-refined reciprocal)
    assert jnp.allclose(jnp.sum(probs, axis=-1), 1.0, atol=1e-3)

    print("KERNEL_OK")
</pallas_src>

<mosaic_0001>
module attributes {stable_mosaic.version = 11 : i64} {
  func.func @actor_critic_fused_kernel(%arg0: i32, %arg1: memref<8x8xf32, #tpu.memory_space<vmem>>, %arg2: memref<288x128xf32, #tpu.memory_space<vmem>>, %arg3: memref<8x8xf32, #tpu.memory_space<vmem>>) attributes {dimension_semantics = [#tpu.dimension_semantics<parallel>], iteration_bounds = array<i64: 1>, scalar_prefetch = 0 : i64, scratch_operands = 0 : i64, tpu.core_type = #tpu.core_type<tc>, window_params = [{transform_indices = @transform_0, window_bounds = array<i64: 8, 8>}, {pipeline_mode = #tpu.pipeline_mode<synchronous>, transform_indices = @transform_1, window_bounds = array<i64: 288, 128>}, {transform_indices = @transform_2, window_bounds = array<i64: 8, 8>}]} {
    %c0 = arith.constant 0 : index
    %c0_0 = arith.constant 0 : index
    %0 = vector.load %arg1[%c0, %c0_0] : memref<8x8xf32, #tpu.memory_space<vmem>>, vector<8x8xf32>
    %c0_1 = arith.constant 0 : index
    %c0_2 = arith.constant 0 : index
    %1 = vector.load %arg2[%c0_1, %c0_2] : memref<288x128xf32, #tpu.memory_space<vmem>>, vector<8x128xf32>
    %c8 = arith.constant 8 : index
    %c0_3 = arith.constant 0 : index
    %2 = vector.load %arg2[%c8, %c0_3] : memref<288x128xf32, #tpu.memory_space<vmem>>, vector<1x128xf32>
    %c16 = arith.constant 16 : index
    %c0_4 = arith.constant 0 : index
    %3 = vector.load %arg2[%c16, %c0_4] : memref<288x128xf32, #tpu.memory_space<vmem>>, vector<128x128xf32>
    %c144 = arith.constant 144 : index
    %c0_5 = arith.constant 0 : index
    %4 = vector.load %arg2[%c144, %c0_5] : memref<288x128xf32, #tpu.memory_space<vmem>>, vector<1x128xf32>
    %c152 = arith.constant 152 : index
    %c0_6 = arith.constant 0 : index
    %5 = vector.load %arg2[%c152, %c0_6] : memref<288x128xf32, #tpu.memory_space<vmem>>, vector<128x128xf32>
    %c280 = arith.constant 280 : index
    %c0_7 = arith.constant 0 : index
    %6 = vector.load %arg2[%c280, %c0_7] : memref<288x128xf32, #tpu.memory_space<vmem>>, vector<1x128xf32>
    %cst = arith.constant dense<0.000000e+00> : vector<8x128xf32>
    %7 = tpu.matmul %0, %1, %cst {dimension_numbers = #tpu.dot_dimension_numbers<[1], [0], [0], [1], [0, 0, 1, 1], [], []>} : vector<8x8xf32>, vector<8x128xf32>, vector<8x128xf32> -> vector<8x128xf32>
    %8 = vector.broadcast %2 : vector<1x128xf32> to vector<8x128xf32>
    %9 = arith.addf %7, %8 : vector<8x128xf32>
    %10 = math.tanh %9 : vector<8x128xf32>
    %cst_8 = arith.constant dense<0.000000e+00> : vector<8x128xf32>
    %11 = tpu.matmul %10, %3, %cst_8 {dimension_numbers = #tpu.dot_dimension_numbers<[1], [0], [0], [1], [0, 0, 1, 1], [], []>} : vector<8x128xf32>, vector<128x128xf32>, vector<8x128xf32> -> vector<8x128xf32>
    %12 = vector.broadcast %4 : vector<1x128xf32> to vector<8x128xf32>
    %13 = arith.addf %11, %12 : vector<8x128xf32>
    %14 = math.tanh %13 : vector<8x128xf32>
    %cst_9 = arith.constant dense<0.000000e+00> : vector<8x128xf32>
    %15 = tpu.matmul %14, %5, %cst_9 {dimension_numbers = #tpu.dot_dimension_numbers<[1], [0], [0], [1], [0, 0, 1, 1], [], []>} : vector<8x128xf32>, vector<128x128xf32>, vector<8x128xf32> -> vector<8x128xf32>
    %16 = vector.broadcast %6 : vector<1x128xf32> to vector<8x128xf32>
    %17 = arith.addf %15, %16 : vector<8x128xf32>
    %18 = tpu.iota {dimensions = array<i32: 1>} : vector<1x128xi32>
    %c2_i32 = arith.constant 2 : i32
    %19 = vector.broadcast %c2_i32 : i32 to vector<1x128xi32>
    %20 = arith.cmpi slt, %18, %19 : vector<1x128xi32>
    %c2_i32_10 = arith.constant 2 : i32
    %21 = vector.broadcast %c2_i32_10 : i32 to vector<1x128xi32>
    %22 = arith.cmpi eq, %18, %21 : vector<1x128xi32>
    %cst_11 = arith.constant 0xFF800000 : f32
    %23 = vector.shape_cast %20 : vector<1x128xi1> to vector<1x128xi1>
    %24 = vector.broadcast %23 : vector<1x128xi1> to vector<8x128xi1>
    %25 = vector.broadcast %cst_11 : f32 to vector<8x128xf32>
    %26 = arith.select %24, %17, %25 : vector<8x128xi1>, vector<8x128xf32>
    %cst_12 = arith.constant dense<0xFF800000> : vector<8xf32>
    %27 = vector.multi_reduction <maximumf>, %26, %cst_12 [1] : vector<8x128xf32> to vector<8xf32>
    %28 = vector.shape_cast %27 : vector<8xf32> to vector<8x1xf32>
    %29 = vector.broadcast %28 : vector<8x1xf32> to vector<8x128xf32>
    %30 = arith.subf %26, %29 : vector<8x128xf32>
    %31 = math.exp %30 : vector<8x128xf32>
    %cst_13 = arith.constant dense<0.000000e+00> : vector<8xf32>
    %32 = vector.multi_reduction <add>, %31, %cst_13 [1] : vector<8x128xf32> to vector<8xf32>
    %33 = vector.shape_cast %32 : vector<8xf32> to vector<8x1xf32>
    %34 = tpu.reciprocal %33 {approx = true} : vector<8x1xf32> -> vector<8x1xf32>
    %35 = arith.mulf %33, %34 : vector<8x1xf32>
    %cst_14 = arith.constant 2.000000e+00 : f32
    %36 = vector.broadcast %cst_14 : f32 to vector<8x1xf32>
    %37 = arith.subf %36, %35 : vector<8x1xf32>
    %38 = arith.mulf %34, %37 : vector<8x1xf32>
    %39 = vector.broadcast %38 : vector<8x1xf32> to vector<8x128xf32>
    %40 = arith.mulf %31, %39 : vector<8x128xf32>
    %41 = vector.shape_cast %22 : vector<1x128xi1> to vector<1x128xi1>
    %42 = vector.broadcast %41 : vector<1x128xi1> to vector<8x128xi1>
    %43 = arith.select %42, %17, %40 : vector<8x128xi1>, vector<8x128xf32>
    %44 = vector.extract_strided_slice %43 {offsets = [0, 0], sizes = [8, 8], strides = [1, 1]} : vector<8x128xf32> to vector<8x8xf32>
    %c0_15 = arith.constant 0 : index
    %c0_16 = arith.constant 0 : index
    %45 = vector.load %arg3[%c0_15, %c0_16] : memref<8x8xf32, #tpu.memory_space<vmem>>, vector<8x8xf32>
    tpu.vector_store %arg3[%c0_15, %c0_16], %44 {strides = array<i32>} : memref<8x8xf32, #tpu.memory_space<vmem>>, vector<8x8xf32>,
    return
  }
  func.func @transform_0(%arg0: i32) -> (i32, i32) {
    %c0_i32 = arith.constant 0 : i32
    %c0_i32_0 = arith.constant 0 : i32
    return %arg0, %c0_i32 : i32, i32
  }
  func.func @transform_1(%arg0: i32) -> (i32, i32) {
    %c0_i32 = arith.constant 0 : i32
    %c0_i32_0 = arith.constant 0 : i32
    %c0_i32_1 = arith.constant 0 : i32
    return %c0_i32, %c0_i32_0 : i32, i32
  }
  func.func @transform_2(%arg0: i32) -> (i32, i32) {
    %c0_i32 = arith.constant 0 : i32
    %c0_i32_0 = arith.constant 0 : i32
    return %arg0, %c0_i32 : i32, i32
  }
}

</mosaic_0001>

<llo_original>
// kernel: forward.1
$region0: #{forward.1}
  #allocation0 [shape = 'u32[]', space=smem, size = 0x4, offset = 0x4, fixed_abs, tag = 'smem constant byte address 0x4 - core index']
  #allocation1 [shape = 'u32[144,128]{1,0:T(1,128)}', space=vmem, size = 0x12000, scoped, tag = 'internal scratch']
  %s0 = inlined_call_operand.vmem [shape: f32[8,8], index: 0, kind: input, shape index: {}]
  %s1 = inlined_call_operand.hbm [shape: f32[288,128], index: 1, kind: input, shape index: {}]
  %s2 = inlined_call_operand.vmem [shape: f32[8,8], index: 2, kind: output, shape index: {}]
  %s3 = sld [smem:[#allocation0]]
  $region22: #{forward.1} parent=0
    _
  %s5 = ssub.s32 1, %s3
  %s6 = scalar_select 0, %s5, %s3
  $region1: #{forward.1} parent=0
    #allocation2 [shape = 'u8[147456]{0}', space=vmem, size = 0x24000, scoped, tag = 'input window, operand 1, single buffered']
    #allocation3 [shape = 's32[1]{0}', space=sflag, size = 0x4, scoped, tag = 'scoped memory for forward.1']
    %7 = vsyncpa [#allocation3], 0
    // Predicated region
    $region2: #{forward.1} parent=1 // pred_check
      _
    $region3: #{forward.1} parent=1 // pred_check_branch
      %9 = sbr.rel (0) target = $region5
    $region4: #{forward.1} parent=1 // pred_region
      _
    $region5: #{forward.1} parent=1 // pred_fallthru
      _
    // Predicated region
    $region6: #{forward.1} parent=1 // pred_check
      _
    $region7: #{forward.1} parent=1 // pred_check_branch
      %11 = sbr.rel (0) target = $region9
    $region8: #{forward.1} parent=1 // pred_region
      %s13 = ssub.s32 4608, 4608
      %14 = vsyncadd [#allocation3], %s13
      %s15 = sshll.u32 [#allocation2], 4
      %s16 = int_to_ptr.vmem [resolvable:$true] %s15
      %21 = dma.hbm_to_vmem [thread:$0]  %s1, 4608, %s16, [#allocation3], 128, 128, 8
    $region9: #{forward.1} parent=1 // pred_fallthru
      _
    // Predicated region
    $region10: #{forward.1} parent=1 // pred_check
      _
    $region11: #{forward.1} parent=1 // pred_check_branch
      %23 = sbr.rel (0) target = $region13
    $region12: #{forward.1} parent=1 // pred_region
      %24 = dma.done [#allocation3], 4608
    $region13: #{forward.1} parent=1 // pred_fallthru
      _
    %v25 = vld [vmem:[%s0] sm:$0xff]
    %v26 = vld [vmem:[#allocation2] sm:$0xff]
    %v27 = vld [vmem:[#allocation2 + $0x8] sm:$0x1]
    %v28 = vld [vmem:[#allocation2 + $0x10] sm:$0xff]
    %v29 = vld [vmem:[#allocation2 + $0x18] sm:$0xff]
    %v30 = vld [vmem:[#allocation2 + $0x20] sm:$0xff]
    %v31 = vld [vmem:[#allocation2 + $0x28] sm:$0xff]
    %v32 = vld [vmem:[#allocation2 + $0x30] sm:$0xff]
    %v33 = vld [vmem:[#allocation2 + $0x38] sm:$0xff]
    %v34 = vld [vmem:[#allocation2 + $0x40] sm:$0xff]
    %v35 = vld [vmem:[#allocation2 + $0x48] sm:$0xff]
    %v36 = vld [vmem:[#allocation2 + $0x50] sm:$0xff]
    %v37 = vld [vmem:[#allocation2 + $0x58] sm:$0xff]
    %v38 = vld [vmem:[#allocation2 + $0x60] sm:$0xff]
    %v39 = vld [vmem:[#allocation2 + $0x68] sm:$0xff]
    %v40 = vld [vmem:[#allocation2 + $0x70] sm:$0xff]
    %v41 = vld [vmem:[#allocation2 + $0x78] sm:$0xff]
    %v42 = vld [vmem:[#allocation2 + $0x80] sm:$0xff]
    %v43 = vld [vmem:[#allocation2 + $0x88] sm:$0xff]
    %v44 = vld [vmem:[#allocation2 + $0x90] sm:$0x1]
    %v45 = vld [vmem:[#allocation2 + $0x98] sm:$0xff]
    %v46 = vld [vmem:[#allocation2 + $0xa0] sm:$0xff]
    %v47 = vld [vmem:[#allocation2 + $0xa8] sm:$0xff]
    %v48 = vld [vmem:[#allocation2 + $0xb0] sm:$0xff]
    %v49 = vld [vmem:[#allocation2 + $0xb8] sm:$0xff]
    %v50 = vld [vmem:[#allocation2 + $0xc0] sm:$0xff]
    %v51 = vld [vmem:[#allocation2 + $0xc8] sm:$0xff]
    %v52 = vld [vmem:[#allocation2 + $0xd0] sm:$0xff]
    %v53 = vld [vmem:[#allocation2 + $0xd8] sm:$0xff]
    %v54 = vld [vmem:[#allocation2 + $0xe0] sm:$0xff]
    %v55 = vld [vmem:[#allocation2 + $0xe8] sm:$0xff]
    %v56 = vld [vmem:[#allocation2 + $0xf0] sm:$0xff]
    %v57 = vld [vmem:[#allocation2 + $0xf8] sm:$0xff]
    %v58 = vld [vmem:[#allocation2 + $0x100] sm:$0xff]
    %v59 = vld [vmem:[#allocation2 + $0x108] sm:$0xff]
    %v60 = vld [vmem:[#allocation2 + $0x110] sm:$0xff]
    %v61 = vld [vmem:[#allocation2 + $0x118] sm:$0x1]
    %v62 = vlaneseq
    %v63 = vshrl.u32 %v62, 7
    %v64 = vsub.s32 0, %v63
    %v65 = vrot.slane %v27, %v64
    %vm66 = vcmask 64512
    %v68 = vsel %vm66, %v25, 0
    %70 = vmatprep.subr.mxu0 0.0
    %71 = vmatpush1.msra.mxu0 0.0
    %72 = vmatprep.subr.mxu0 0.0
    %73 = vmatpush1.msra.mxu0 0.0
    %74 = vmatprep.subr.mxu0 0.0
    %75 = vmatpush1.msra.mxu0 0.0
    %76 = vmatprep.subr.mxu0 0.0
    %77 = vmatpush1.msra.mxu0 0.0
    %78 = vmatprep.subr.mxu0 0.0
    %79 = vmatpush1.msra.mxu0 0.0
    %80 = vmatprep.subr.mxu0 0.0
    %81 = vmatpush1.msra.mxu0 0.0
    %82 = vmatprep.subr.mxu0 0.0
    %83 = vmatpush1.msra.mxu0 0.0
    %84 = vmatprep.subr.mxu0 0.0
    %85 = vmatpush1.msra.mxu0 0.0
    %86 = vmatprep.subr.mxu0 0.0
    %87 = vmatpush1.msra.mxu0 0.0
    %88 = vmatprep.subr.mxu0 0.0
    %89 = vmatpush1.msra.mxu0 0.0
    %90 = vmatprep.subr.mxu0 0.0
    %91 = vmatpush1.msra.mxu0 0.0
    %92 = vmatprep.subr.mxu0 0.0
    %93 = vmatpush1.msra.mxu0 0.0
    %94 = vmatprep.subr.mxu0 0.0
    %95 = vmatpush1.msra.mxu0 0.0
    %96 = vmatprep.subr.mxu0 0.0
    %97 = vmatpush1.msra.mxu0 0.0
    %98 = vmatprep.subr.mxu0 0.0
    %99 = vmatpush1.msra.mxu0 0.0
    %100 = vmatprep.subr.mxu0 0.0
    %101 = vmatpush1.msra.mxu0 %v26
    %102 = vmatprep.subr.mxu0 0.0
    %103 = vmatpush2.msra.mxu0 0.0
    %104 = vmatprep.subr.mxu0 0.0
    %105 = vmatpush2.msra.mxu0 0.0
    %106 = vmatprep.subr.mxu0 0.0
    %107 = vmatpush2.msra.mxu0 0.0
    %108 = vmatprep.subr.mxu0 0.0
    %109 = vmatpush2.msra.mxu0 0.0
    %110 = vmatprep.subr.mxu0 0.0
    %111 = vmatpush2.msra.mxu0 0.0
    %112 = vmatprep.subr.mxu0 0.0
    %113 = vmatpush2.msra.mxu0 0.0
    %114 = vmatprep.subr.mxu0 0.0
    %115 = vmatpush2.msra.mxu0 0.0
    %116 = vmatprep.subr.mxu0 0.0
    %117 = vmatpush2.msra.mxu0 0.0
    %118 = vmatprep.subr.mxu0 0.0
    %119 = vmatpush2.msra.mxu0 0.0
    %120 = vmatprep.subr.mxu0 0.0
    %121 = vmatpush2.msra.mxu0 0.0
    %122 = vmatprep.subr.mxu0 0.0
    %123 = vmatpush2.msra.mxu0 0.0
    %124 = vmatprep.subr.mxu0 0.0
    %125 = vmatpush2.msra.mxu0 0.0
    %126 = vmatprep.subr.mxu0 0.0
    %127 = vmatpush2.msra.mxu0 0.0
    %128 = vmatprep.subr.mxu0 0.0
    %129 = vmatpush2.msra.mxu0 0.0
    %130 = vmatprep.subr.mxu0 0.0
    %131 = vmatpush2.msra.mxu0 0.0
    %132 = vmatprep.subr.mxu0 0.0
    %133 = vmatpush2.msra.mxu0 0.0
    %134 = vmatprep.mubr.f32.mxu0 0.0
    %135 = vmatmul.mubr.f32.gmra.mxu0 %v68
    %v136 = vpop.f32.mrf.mxu0
    %v137 = vadd.f32 %v65, %v136
    %v138 = vpop.f32.mrf.mxu0
    %139 = vdwg.mxu0
    %v140 = vtanh.pop %v137
    %v141 = vlaneseq
    %v142 = vshrl.u32 %v141, 7
    %v143 = vsub.s32 0, %v142
    %v144 = vrot.slane %v44, %v143
    %145 = vmatprep.subr.mxu0 0.0
    %146 = vmatpush1.msra.mxu0 %v43
    %147 = vmatprep.subr.mxu0 0.0
    %148 = vmatpush1.msra.mxu0 %v42
    %149 = vmatprep.subr.mxu0 0.0
    %150 = vmatpush1.msra.mxu0 %v41
    %151 = vmatprep.subr.mxu0 0.0
    %152 = vmatpush1.msra.mxu0 %v40
    %153 = vmatprep.subr.mxu0 0.0
    %154 = vmatpush1.msra.mxu0 %v39
    %155 = vmatprep.subr.mxu0 0.0
    %156 = vmatpush1.msra.mxu0 %v38
    %157 = vmatprep.subr.mxu0 0.0
    %158 = vmatpush1.msra.mxu0 %v37
    %159 = vmatprep.subr.mxu0 0.0
    %160 = vmatpush1.msra.mxu0 %v36
    %161 = vmatprep.subr.mxu0 0.0
    %162 = vmatpush1.msra.mxu0 %v35
    %163 = vmatprep.subr.mxu0 0.0
    %164 = vmatpush1.msra.mxu0 %v34
    %165 = vmatprep.subr.mxu0 0.0
    %166 = vmatpush1.msra.mxu0 %v33
    %167 = vmatprep.subr.mxu0 0.0
    %168 = vmatpush1.msra.mxu0 %v32
    %169 = vmatprep.subr.mxu0 0.0
    %170 = vmatpush1.msra.mxu0 %v31
    %171 = vmatprep.subr.mxu0 0.0
    %172 = vmatpush1.msra.mxu0 %v30
    %173 = vmatprep.subr.mxu0 0.0
    %174 = vmatpush1.msra.mxu0 %v29
    %175 = vmatprep.subr.mxu0 0.0
    %176 = vmatpush1.msra.mxu0 %v28
    %177 = vmatprep.subr.mxu0 0.0
    %178 = vmatpush2.msra.mxu0 0.0
    %179 = vmatprep.subr.mxu0 0.0
    %180 = vmatpush2.msra.mxu0 0.0
    %181 = vmatprep.subr.mxu0 0.0
    %182 = vmatpush2.msra.mxu0 0.0
    %183 = vmatprep.subr.mxu0 0.0
    %184 = vmatpush2.msra.mxu0 0.0
    %185 = vmatprep.subr.mxu0 0.0
    %186 = vmatpush2.msra.mxu0 0.0
    %187 = vmatprep.subr.mxu0 0.0
    %188 = vmatpush2.msra.mxu0 0.0
    %189 = vmatprep.subr.mxu0 0.0
    %190 = vmatpush2.msra.mxu0 0.0
    %191 = vmatprep.subr.mxu0 0.0
    %192 = vmatpush2.msra.mxu0 0.0
    %193 = vmatprep.subr.mxu0 0.0
    %194 = vmatpush2.msra.mxu0 0.0
    %195 = vmatprep.subr.mxu0 0.0
    %196 = vmatpush2.msra.mxu0 0.0
    %197 = vmatprep.subr.mxu0 0.0
    %198 = vmatpush2.msra.mxu0 0.0
    %199 = vmatprep.subr.mxu0 0.0
    %200 = vmatpush2.msra.mxu0 0.0
    %201 = vmatprep.subr.mxu0 0.0
    %202 = vmatpush2.msra.mxu0 0.0
    %203 = vmatprep.subr.mxu0 0.0
    %204 = vmatpush2.msra.mxu0 0.0
    %205 = vmatprep.subr.mxu0 0.0
    %206 = vmatpush2.msra.mxu0 0.0
    %207 = vmatprep.subr.mxu0 0.0
    %208 = vmatpush2.msra.mxu0 0.0
    %209 = vmatprep.mubr.f32.mxu0 0.0
    %210 = vmatmul.mubr.f32.gmra.mxu0 %v140
    %v211 = vpop.f32.mrf.mxu0
    %v212 = vadd.f32 %v144, %v211
    %v213 = vpop.f32.mrf.mxu0
    %214 = vdwg.mxu0
    %v215 = vtanh.pop %v212
    %v216 = vlaneseq
    %v217 = vshrl.u32 %v216, 7
    %v218 = vsub.s32 0, %v217
    %v219 = vrot.slane %v61, %v218
    %220 = vmatprep.subr.mxu0 0.0
    %221 = vmatpush1.msra.mxu0 %v60
    %222 = vmatprep.subr.mxu0 0.0
    %223 = vmatpush1.msra.mxu0 %v59
    %224 = vmatprep.subr.mxu0 0.0
    %225 = vmatpush1.msra.mxu0 %v58
    %226 = vmatprep.subr.mxu0 0.0
    %227 = vmatpush1.msra.mxu0 %v57
    %228 = vmatprep.subr.mxu0 0.0
    %229 = vmatpush1.msra.mxu0 %v56
    %230 = vmatprep.subr.mxu0 0.0
    %231 = vmatpush1.msra.mxu0 %v55
    %232 = vmatprep.subr.mxu0 0.0
    %233 = vmatpush1.msra.mxu0 %v54
    %234 = vmatprep.subr.mxu0 0.0
    %235 = vmatpush1.msra.mxu0 %v53
    %236 = vmatprep.subr.mxu0 0.0
    %237 = vmatpush1.msra.mxu0 %v52
    %238 = vmatprep.subr.mxu0 0.0
    %239 = vmatpush1.msra.mxu0 %v51
    %240 = vmatprep.subr.mxu0 0.0
    %241 = vmatpush1.msra.mxu0 %v50
    %242 = vmatprep.subr.mxu0 0.0
    %243 = vmatpush1.msra.mxu0 %v49
    %244 = vmatprep.subr.mxu0 0.0
    %245 = vmatpush1.msra.mxu0 %v48
    %246 = vmatprep.subr.mxu0 0.0
    %247 = vmatpush1.msra.mxu0 %v47
    %248 = vmatprep.subr.mxu0 0.0
    %249 = vmatpush1.msra.mxu0 %v46
    %250 = vmatprep.subr.mxu0 0.0
    %251 = vmatpush1.msra.mxu0 %v45
    %252 = vmatprep.subr.mxu0 0.0
    %253 = vmatpush2.msra.mxu0 0.0
    %254 = vmatprep.subr.mxu0 0.0
    %255 = vmatpush2.msra.mxu0 0.0
    %256 = vmatprep.subr.mxu0 0.0
    %257 = vmatpush2.msra.mxu0 0.0
    %258 = vmatprep.subr.mxu0 0.0
    %259 = vmatpush2.msra.mxu0 0.0
    %260 = vmatprep.subr.mxu0 0.0
    %261 = vmatpush2.msra.mxu0 0.0
    %262 = vmatprep.subr.mxu0 0.0
    %263 = vmatpush2.msra.mxu0 0.0
    %264 = vmatprep.subr.mxu0 0.0
    %265 = vmatpush2.msra.mxu0 0.0
    %266 = vmatprep.subr.mxu0 0.0
    %267 = vmatpush2.msra.mxu0 0.0
    %268 = vmatprep.subr.mxu0 0.0
    %269 = vmatpush2.msra.mxu0 0.0
    %270 = vmatprep.subr.mxu0 0.0
    %271 = vmatpush2.msra.mxu0 0.0
    %272 = vmatprep.subr.mxu0 0.0
    %273 = vmatpush2.msra.mxu0 0.0
    %274 = vmatprep.subr.mxu0 0.0
    %275 = vmatpush2.msra.mxu0 0.0
    %276 = vmatprep.subr.mxu0 0.0
    %277 = vmatpush2.msra.mxu0 0.0
    %278 = vmatprep.subr.mxu0 0.0
    %279 = vmatpush2.msra.mxu0 0.0
    %280 = vmatprep.subr.mxu0 0.0
    %281 = vmatpush2.msra.mxu0 0.0
    %282 = vmatprep.subr.mxu0 0.0
    %283 = vmatpush2.msra.mxu0 0.0
    %284 = vmatprep.mubr.f32.mxu0 0.0
    %285 = vmatmul.mubr.f32.gmra.mxu0 %v215
    %v286 = vpop.f32.mrf.mxu0
    %v287 = vadd.f32 %v219, %v286
    %v288 = vpop.f32.mrf.mxu0
    %289 = vdwg.mxu0
    %v290 = vlaneseq
    %v291 = vand.u32 %v290, 127
    %vm292 = vcmp.lt.s32.totalorder %v291, 2
    %vm293 = vcmp.eq.s32.totalorder %v291, 2
    %v294 = vsel %vm292, 1, 0
    %vm295 = vcmp.eq.s32.totalorder %v294, 1
    %v296 = vsel %vm295, %v287, -inf
    %297 = vmax.xlane.f32.xlu0 %v296
    %v298 = vpop.xlane.xlu0 %297
    %v299 = vsub.f32 %v296, %v298
    %v300 = vmul.f32 %v299, 1.442695
    %v301 = vpow.pop %v300
    %302 = vadd.xlane.f32.xlu0 %v301
    %v303 = vpop.xlane.xlu0 %302
    %v304 = vrcp.pop %v303
    %v305 = vmul.f32 %v303, %v304
    %v306 = vsub.f32 2.0, %v305
    %v307 = vmul.f32 %v304, %v306
    %v308 = vmul.f32 %v301, %v307
    %v309 = vsel %vm293, 1, 0
    %vm310 = vcmp.eq.s32.totalorder %v309, 1
    %v311 = vsel %vm310, %v287, %v308
    %312 = vst.msk [vmem:[%s2] sm:$0xff] %vm66, %v311
    // Predicated region
    $region14: #{forward.1} parent=1 // pred_check
      _
    $region15: #{forward.1} parent=1 // pred_check_branch
      %314 = sbr.rel (0) target = $region17
    $region16: #{forward.1} parent=1 // pred_region
      _
    $region17: #{forward.1} parent=1 // pred_fallthru
      _
    // Predicated region
    $region18: #{forward.1} parent=1 // pred_check
      _
    $region19: #{forward.1} parent=1 // pred_check_branch
      %316 = sbr.rel (0) target = $region21
    $region20: #{forward.1} parent=1 // pred_region
      _
    $region21: #{forward.1} parent=1 // pred_fallthru
      _
    %317 = vsyncpa [#allocation3], 1

</llo_original>
